<compile_context>
chip_gen: v7x
topology: tpu7x:2x2x1
jax: 0.10.0
libtpu: 0.0.40
codegen_flags: <defaults>
</compile_context>

<pallas_src>
import functools

import numpy as np
import jax
import jax.numpy as jnp
from jax import lax
from jax.experimental import pallas as pl
from jax.experimental.pallas import tpu as pltpu


def _omega_kernel(x_ref, w_ref, o_ref, *, B, Tblk, C):
    """One grid step: x block (B, Tblk, C) -> out block (C//2, 2B, Tblk)."""
    Q = C // 2

    # --- ±||omega_param||_2 per batch row, built entirely in-kernel ------------
    w = w_ref[...].astype(jnp.float32)                        # (B, 2)
    om = jnp.sqrt(jnp.sum(w * w, axis=-1, keepdims=True))     # (B, 1): XLU reduce + EUP sqrt
    om_bt = jnp.broadcast_to(om, (B, Tblk))                   # (B, Tblk): lane broadcast

    # --- constant pair-swap / sign matrix: S[2q,2q+1]=+1, S[2q+1,2q]=-1 --------
    r = lax.broadcasted_iota(jnp.int32, (C, C), 0)
    c = lax.broadcasted_iota(jnp.int32, (C, C), 1)
    swap = c == jnp.bitwise_xor(r, 1)                         # partner channel c = r ^ 1
    S = jnp.where(swap, jnp.where(c > r, 1.0, -1.0), 0.0).astype(jnp.float32)

    for b in range(B):                                        # B is tiny: fully unrolled
        xb = x_ref[b].astype(jnp.float32)                     # (Tblk, C), native layout
        # z[c, t] = sum_k S[c, k] * x[b, t, k]
        #   -> fuses the T<->C transpose, the pair swap and the sign into one
        #      MXU matmul (contract-last-dims form, as in the flash reference).
        zb = lax.dot_general(S, xb, (((1,), (1,)), ((), ())),
                             preferred_element_type=jnp.float32)     # (C, Tblk)
        zb = zb * om_bt[b:b + 1, :]                           # (1, Tblk): sublane broadcast
        for q in range(Q):
            # out[q, 2b]   =  omega[b] * x[b, :, 2q+1]
            # out[q, 2b+1] = -omega[b] * x[b, :, 2q]
            o_ref[q, 2 * b:2 * b + 2, :] = zb[2 * q:2 * q + 2, :].astype(o_ref.dtype)


def omega_module_forward(x, omega_param):
    B, T, C = x.shape
    Q = C // 2
    P = omega_param.shape[0]                                  # hidden_dim // 2
    assert P == B, "OmegaModule's literal (1,P,1,1) broadcast requires hidden_dim//2 == batch"
    out_dtype = jnp.result_type(x.dtype, omega_param.dtype)   # match PyTorch promotion

    # Lane-dense guard + tiling: keep the minor (T) dim a multiple of 128 and
    # tile T so per-step VMEM stays small on v7x.  Demo: one 128-wide step.
    TILE_T = 512
    if T <= TILE_T:
        Tp = max(128, ((T + 127) // 128) * 128)
        tT = Tp
    else:
        Tp = ((T + TILE_T - 1) // TILE_T) * TILE_T
        tT = TILE_T
    xp = x if Tp == T else jnp.pad(x, ((0, 0), (0, Tp - T), (0, 0)))

    kernel = functools.partial(_omega_kernel, B=B, Tblk=tT, C=C)
    out3 = pl.pallas_call(
        kernel,
        grid=(Tp // tT,),
        in_specs=[
            pl.BlockSpec((B, tT, C), lambda t: (0, t, 0)),    # x, native (B,T,C) layout
            pl.BlockSpec((P, 2), lambda t: (0, 0)),           # omega_param, whole
        ],
        out_specs=pl.BlockSpec((Q, 2 * B, tT), lambda t: (0, 0, t)),
        out_shape=jax.ShapeDtypeStruct((Q, 2 * B, Tp), out_dtype),
        compiler_params=pltpu.CompilerParams(dimension_semantics=("parallel",)),
    )(xp, omega_param)

    if Tp != T:
        out3 = out3[..., :T]
    # Free view: (Q, 2B, T) -> (1, Q, 2B, T), exactly the PyTorch output layout.
    return out3.reshape(1, Q, 2 * B, T)


def omega_module_reference(x, omega_param):
    """Pure-JAX literal transcription of the PyTorch forward (for checking)."""
    B, T, C = x.shape
    x_r = jnp.transpose(x, (0, 2, 1)).reshape(B, C // 2, 2, T)
    omega = jnp.sqrt(jnp.sum(omega_param * omega_param, axis=1))
    omega = omega.reshape(1, omega.shape[0], 1, 1)
    a = omega * x_r[:, :, 1]
    b = -omega * x_r[:, :, 0]
    st = jnp.stack([a, b], axis=2)                            # (1, B, 2, C//2, T)
    out = st.reshape(st.shape[0], st.shape[1] * st.shape[2], st.shape[3], st.shape[4])
    return jnp.transpose(out, (0, 2, 1, 3))                   # (1, C//2, 2B, T)


if __name__ == "__main__":
    hidden_dim = 8
    C = hidden_dim
    B = hidden_dim // 2       # required for the module's broadcast to be valid
    T = 128

    key = jax.random.PRNGKey(0)
    x = jax.random.normal(key, (B, T, C), dtype=jnp.float32)
    # Deterministic parameter init, exactly as in __init__: 1/sqrt(2) * ones.
    omega_param = (1.0 / np.sqrt(2.0)) * jnp.ones((hidden_dim // 2, 2), jnp.float32)

    fwd = jax.jit(omega_module_forward)
    out = jax.block_until_ready(fwd(x, omega_param))

    ref = omega_module_reference(x, omega_param)
    assert out.shape == ref.shape == (1, C // 2, 2 * B, T), (out.shape, ref.shape)
    assert jnp.allclose(out, ref, atol=1e-5, rtol=1e-5)
    print("KERNEL_OK")
</pallas_src>

<mosaic_0001>
module attributes {stable_mosaic.version = 11 : i64} {
  func.func @_omega_kernel(%arg0: i32, %arg1: memref<4x128x8xf32, #tpu.memory_space<vmem>>, %arg2: memref<4x2xf32, #tpu.memory_space<vmem>>, %arg3: memref<4x8x128xf32, #tpu.memory_space<vmem>>) attributes {dimension_semantics = [#tpu.dimension_semantics<parallel>], iteration_bounds = array<i64: 1>, scalar_prefetch = 0 : i64, scratch_operands = 0 : i64, tpu.core_type = #tpu.core_type<tc>, window_params = [{transform_indices = @transform_0, window_bounds = array<i64: 4, 128, 8>}, {pipeline_mode = #tpu.pipeline_mode<synchronous>, transform_indices = @transform_1, window_bounds = array<i64: 4, 2>}, {transform_indices = @transform_2, window_bounds = array<i64: 4, 8, 128>}]} {
    %c0 = arith.constant 0 : index
    %c0_0 = arith.constant 0 : index
    %0 = vector.load %arg2[%c0, %c0_0] : memref<4x2xf32, #tpu.memory_space<vmem>>, vector<4x2xf32>
    %1 = arith.mulf %0, %0 : vector<4x2xf32>
    %cst = arith.constant dense<0.000000e+00> : vector<4xf32>
    %2 = vector.multi_reduction <add>, %1, %cst [1] : vector<4x2xf32> to vector<4xf32>
    %3 = vector.shape_cast %2 : vector<4xf32> to vector<4x1xf32>
    %4 = math.sqrt %3 : vector<4x1xf32>
    %5 = vector.shape_cast %4 : vector<4x1xf32> to vector<4x1xf32>
    %6 = vector.broadcast %5 : vector<4x1xf32> to vector<4x128xf32>
    %7 = tpu.iota {dimensions = array<i32: 0>} : vector<8x8xi32>
    %8 = tpu.iota {dimensions = array<i32: 1>} : vector<8x8xi32>
    %c1_i32 = arith.constant 1 : i32
    %9 = vector.broadcast %c1_i32 : i32 to vector<8x8xi32>
    %10 = arith.xori %7, %9 : vector<8x8xi32>
    %11 = arith.cmpi eq, %8, %10 : vector<8x8xi32>
    %12 = arith.cmpi sgt, %8, %7 : vector<8x8xi32>
    %cst_1 = arith.constant 1.000000e+00 : f32
    %cst_2 = arith.constant -1.000000e+00 : f32
    %13 = vector.broadcast %cst_1 : f32 to vector<8x8xf32>
    %14 = vector.broadcast %cst_2 : f32 to vector<8x8xf32>
    %15 = arith.select %12, %13, %14 : vector<8x8xi1>, vector<8x8xf32>
    %cst_3 = arith.constant 0.000000e+00 : f32
    %16 = vector.broadcast %cst_3 : f32 to vector<8x8xf32>
    %17 = arith.select %11, %15, %16 : vector<8x8xi1>, vector<8x8xf32>
    %c0_4 = arith.constant 0 : index
    %c0_5 = arith.constant 0 : index
    %c0_6 = arith.constant 0 : index
    %18 = vector.load %arg1[%c0_4, %c0_5, %c0_6] : memref<4x128x8xf32, #tpu.memory_space<vmem>>, vector<1x128x8xf32>
    %19 = vector.shape_cast %18 : vector<1x128x8xf32> to vector<128x8xf32>
    %cst_7 = arith.constant dense<0.000000e+00> : vector<8x128xf32>
    %20 = tpu.matmul %17, %19, %cst_7 {dimension_numbers = #tpu.dot_dimension_numbers<[1], [1], [0], [0], [0, 0, 1, 0], [], []>} : vector<8x8xf32>, vector<128x8xf32>, vector<8x128xf32> -> vector<8x128xf32>
    %21 = vector.extract_strided_slice %6 {offsets = [0, 0], sizes = [1, 128], strides = [1, 1]} : vector<4x128xf32> to vector<1x128xf32>
    %22 = vector.broadcast %21 : vector<1x128xf32> to vector<8x128xf32>
    %23 = arith.mulf %20, %22 : vector<8x128xf32>
    %24 = vector.extract_strided_slice %23 {offsets = [0, 0], sizes = [2, 128], strides = [1, 1]} : vector<8x128xf32> to vector<2x128xf32>
    %c0_8 = arith.constant 0 : index
    %c0_9 = arith.constant 0 : index
    %c0_10 = arith.constant 0 : index
    %25 = vector.load %arg3[%c0_8, %c0_9, %c0_10] : memref<4x8x128xf32, #tpu.memory_space<vmem>>, vector<1x2x128xf32>
    %26 = vector.shape_cast %25 : vector<1x2x128xf32> to vector<2x128xf32>
    %27 = vector.shape_cast %24 : vector<2x128xf32> to vector<1x2x128xf32>
    tpu.vector_store %arg3[%c0_8, %c0_9, %c0_10], %27 {strides = array<i32>} : memref<4x8x128xf32, #tpu.memory_space<vmem>>, vector<1x2x128xf32>,
    %28 = vector.extract_strided_slice %23 {offsets = [2, 0], sizes = [2, 128], strides = [1, 1]} : vector<8x128xf32> to vector<2x128xf32>
    %c1 = arith.constant 1 : index
    %c0_11 = arith.constant 0 : index
    %c0_12 = arith.constant 0 : index
    %29 = vector.load %arg3[%c1, %c0_11, %c0_12] : memref<4x8x128xf32, #tpu.memory_space<vmem>>, vector<1x2x128xf32>
    %30 = vector.shape_cast %29 : vector<1x2x128xf32> to vector<2x128xf32>
    %31 = vector.shape_cast %28 : vector<2x128xf32> to vector<1x2x128xf32>
    tpu.vector_store %arg3[%c1, %c0_11, %c0_12], %31 {strides = array<i32>} : memref<4x8x128xf32, #tpu.memory_space<vmem>>, vector<1x2x128xf32>,
    %32 = vector.extract_strided_slice %23 {offsets = [4, 0], sizes = [2, 128], strides = [1, 1]} : vector<8x128xf32> to vector<2x128xf32>
    %c2 = arith.constant 2 : index
    %c0_13 = arith.constant 0 : index
    %c0_14 = arith.constant 0 : index
    %33 = vector.load %arg3[%c2, %c0_13, %c0_14] : memref<4x8x128xf32, #tpu.memory_space<vmem>>, vector<1x2x128xf32>
    %34 = vector.shape_cast %33 : vector<1x2x128xf32> to vector<2x128xf32>
    %35 = vector.shape_cast %32 : vector<2x128xf32> to vector<1x2x128xf32>
    tpu.vector_store %arg3[%c2, %c0_13, %c0_14], %35 {strides = array<i32>} : memref<4x8x128xf32, #tpu.memory_space<vmem>>, vector<1x2x128xf32>,
    %36 = vector.extract_strided_slice %23 {offsets = [6, 0], sizes = [2, 128], strides = [1, 1]} : vector<8x128xf32> to vector<2x128xf32>
    %c3 = arith.constant 3 : index
    %c0_15 = arith.constant 0 : index
    %c0_16 = arith.constant 0 : index
    %37 = vector.load %arg3[%c3, %c0_15, %c0_16] : memref<4x8x128xf32, #tpu.memory_space<vmem>>, vector<1x2x128xf32>
    %38 = vector.shape_cast %37 : vector<1x2x128xf32> to vector<2x128xf32>
    %39 = vector.shape_cast %36 : vector<2x128xf32> to vector<1x2x128xf32>
    tpu.vector_store %arg3[%c3, %c0_15, %c0_16], %39 {strides = array<i32>} : memref<4x8x128xf32, #tpu.memory_space<vmem>>, vector<1x2x128xf32>,
    %c1_17 = arith.constant 1 : index
    %c0_18 = arith.constant 0 : index
    %c0_19 = arith.constant 0 : index
    %40 = vector.load %arg1[%c1_17, %c0_18, %c0_19] : memref<4x128x8xf32, #tpu.memory_space<vmem>>, vector<1x128x8xf32>
    %41 = vector.shape_cast %40 : vector<1x128x8xf32> to vector<128x8xf32>
    %cst_20 = arith.constant dense<0.000000e+00> : vector<8x128xf32>
    %42 = tpu.matmul %17, %41, %cst_20 {dimension_numbers = #tpu.dot_dimension_numbers<[1], [1], [0], [0], [0, 0, 1, 0], [], []>} : vector<8x8xf32>, vector<128x8xf32>, vector<8x128xf32> -> vector<8x128xf32>
    %43 = vector.extract_strided_slice %6 {offsets = [1, 0], sizes = [1, 128], strides = [1, 1]} : vector<4x128xf32> to vector<1x128xf32>
    %44 = vector.broadcast %43 : vector<1x128xf32> to vector<8x128xf32>
    %45 = arith.mulf %42, %44 : vector<8x128xf32>
    %46 = vector.extract_strided_slice %45 {offsets = [0, 0], sizes = [2, 128], strides = [1, 1]} : vector<8x128xf32> to vector<2x128xf32>
    %c0_21 = arith.constant 0 : index
    %c2_22 = arith.constant 2 : index
    %c0_23 = arith.constant 0 : index
    %47 = vector.load %arg3[%c0_21, %c2_22, %c0_23] : memref<4x8x128xf32, #tpu.memory_space<vmem>>, vector<1x2x128xf32>
    %48 = vector.shape_cast %47 : vector<1x2x128xf32> to vector<2x128xf32>
    %49 = vector.shape_cast %46 : vector<2x128xf32> to vector<1x2x128xf32>
    tpu.vector_store %arg3[%c0_21, %c2_22, %c0_23], %49 {strides = array<i32>} : memref<4x8x128xf32, #tpu.memory_space<vmem>>, vector<1x2x128xf32>,
    %50 = vector.extract_strided_slice %45 {offsets = [2, 0], sizes = [2, 128], strides = [1, 1]} : vector<8x128xf32> to vector<2x128xf32>
    %c1_24 = arith.constant 1 : index
    %c2_25 = arith.constant 2 : index
    %c0_26 = arith.constant 0 : index
    %51 = vector.load %arg3[%c1_24, %c2_25, %c0_26] : memref<4x8x128xf32, #tpu.memory_space<vmem>>, vector<1x2x128xf32>
    %52 = vector.shape_cast %51 : vector<1x2x128xf32> to vector<2x128xf32>
    %53 = vector.shape_cast %50 : vector<2x128xf32> to vector<1x2x128xf32>
    tpu.vector_store %arg3[%c1_24, %c2_25, %c0_26], %53 {strides = array<i32>} : memref<4x8x128xf32, #tpu.memory_space<vmem>>, vector<1x2x128xf32>,
    %54 = vector.extract_strided_slice %45 {offsets = [4, 0], sizes = [2, 128], strides = [1, 1]} : vector<8x128xf32> to vector<2x128xf32>
    %c2_27 = arith.constant 2 : index
    %c2_28 = arith.constant 2 : index
    %c0_29 = arith.constant 0 : index
    %55 = vector.load %arg3[%c2_27, %c2_28, %c0_29] : memref<4x8x128xf32, #tpu.memory_space<vmem>>, vector<1x2x128xf32>
    %56 = vector.shape_cast %55 : vector<1x2x128xf32> to vector<2x128xf32>
    %57 = vector.shape_cast %54 : vector<2x128xf32> to vector<1x2x128xf32>
    tpu.vector_store %arg3[%c2_27, %c2_28, %c0_29], %57 {strides = array<i32>} : memref<4x8x128xf32, #tpu.memory_space<vmem>>, vector<1x2x128xf32>,
    %58 = vector.extract_strided_slice %45 {offsets = [6, 0], sizes = [2, 128], strides = [1, 1]} : vector<8x128xf32> to vector<2x128xf32>
    %c3_30 = arith.constant 3 : index
    %c2_31 = arith.constant 2 : index
    %c0_32 = arith.constant 0 : index
    %59 = vector.load %arg3[%c3_30, %c2_31, %c0_32] : memref<4x8x128xf32, #tpu.memory_space<vmem>>, vector<1x2x128xf32>
    %60 = vector.shape_cast %59 : vector<1x2x128xf32> to vector<2x128xf32>
    %61 = vector.shape_cast %58 : vector<2x128xf32> to vector<1x2x128xf32>
    tpu.vector_store %arg3[%c3_30, %c2_31, %c0_32], %61 {strides = array<i32>} : memref<4x8x128xf32, #tpu.memory_space<vmem>>, vector<1x2x128xf32>,
    %c2_33 = arith.constant 2 : index
    %c0_34 = arith.constant 0 : index
    %c0_35 = arith.constant 0 : index
    %62 = vector.load %arg1[%c2_33, %c0_34, %c0_35] : memref<4x128x8xf32, #tpu.memory_space<vmem>>, vector<1x128x8xf32>
    %63 = vector.shape_cast %62 : vector<1x128x8xf32> to vector<128x8xf32>
    %cst_36 = arith.constant dense<0.000000e+00> : vector<8x128xf32>
    %64 = tpu.matmul %17, %63, %cst_36 {dimension_numbers = #tpu.dot_dimension_numbers<[1], [1], [0], [0], [0, 0, 1, 0], [], []>} : vector<8x8xf32>, vector<128x8xf32>, vector<8x128xf32> -> vector<8x128xf32>
    %65 = vector.extract_strided_slice %6 {offsets = [2, 0], sizes = [1, 128], strides = [1, 1]} : vector<4x128xf32> to vector<1x128xf32>
    %66 = vector.broadcast %65 : vector<1x128xf32> to vector<8x128xf32>
    %67 = arith.mulf %64, %66 : vector<8x128xf32>
    %68 = vector.extract_strided_slice %67 {offsets = [0, 0], sizes = [2, 128], strides = [1, 1]} : vector<8x128xf32> to vector<2x128xf32>
    %c0_37 = arith.constant 0 : index
    %c4 = arith.constant 4 : index
    %c0_38 = arith.constant 0 : index
    %69 = vector.load %arg3[%c0_37, %c4, %c0_38] : memref<4x8x128xf32, #tpu.memory_space<vmem>>, vector<1x2x128xf32>
    %70 = vector.shape_cast %69 : vector<1x2x128xf32> to vector<2x128xf32>
    %71 = vector.shape_cast %68 : vector<2x128xf32> to vector<1x2x128xf32>
    tpu.vector_store %arg3[%c0_37, %c4, %c0_38], %71 {strides = array<i32>} : memref<4x8x128xf32, #tpu.memory_space<vmem>>, vector<1x2x128xf32>,
    %72 = vector.extract_strided_slice %67 {offsets = [2, 0], sizes = [2, 128], strides = [1, 1]} : vector<8x128xf32> to vector<2x128xf32>
    %c1_39 = arith.constant 1 : index
    %c4_40 = arith.constant 4 : index
    %c0_41 = arith.constant 0 : index
    %73 = vector.load %arg3[%c1_39, %c4_40, %c0_41] : memref<4x8x128xf32, #tpu.memory_space<vmem>>, vector<1x2x128xf32>
    %74 = vector.shape_cast %73 : vector<1x2x128xf32> to vector<2x128xf32>
    %75 = vector.shape_cast %72 : vector<2x128xf32> to vector<1x2x128xf32>
    tpu.vector_store %arg3[%c1_39, %c4_40, %c0_41], %75 {strides = array<i32>} : memref<4x8x128xf32, #tpu.memory_space<vmem>>, vector<1x2x128xf32>,
    %76 = vector.extract_strided_slice %67 {offsets = [4, 0], sizes = [2, 128], strides = [1, 1]} : vector<8x128xf32> to vector<2x128xf32>
    %c2_42 = arith.constant 2 : index
    %c4_43 = arith.constant 4 : index
    %c0_44 = arith.constant 0 : index
    %77 = vector.load %arg3[%c2_42, %c4_43, %c0_44] : memref<4x8x128xf32, #tpu.memory_space<vmem>>, vector<1x2x128xf32>
    %78 = vector.shape_cast %77 : vector<1x2x128xf32> to vector<2x128xf32>
    %79 = vector.shape_cast %76 : vector<2x128xf32> to vector<1x2x128xf32>
    tpu.vector_store %arg3[%c2_42, %c4_43, %c0_44], %79 {strides = array<i32>} : memref<4x8x128xf32, #tpu.memory_space<vmem>>, vector<1x2x128xf32>,
    %80 = vector.extract_strided_slice %67 {offsets = [6, 0], sizes = [2, 128], strides = [1, 1]} : vector<8x128xf32> to vector<2x128xf32>
    %c3_45 = arith.constant 3 : index
    %c4_46 = arith.constant 4 : index
    %c0_47 = arith.constant 0 : index
    %81 = vector.load %arg3[%c3_45, %c4_46, %c0_47] : memref<4x8x128xf32, #tpu.memory_space<vmem>>, vector<1x2x128xf32>
    %82 = vector.shape_cast %81 : vector<1x2x128xf32> to vector<2x128xf32>
    %83 = vector.shape_cast %80 : vector<2x128xf32> to vector<1x2x128xf32>
    tpu.vector_store %arg3[%c3_45, %c4_46, %c0_47], %83 {strides = array<i32>} : memref<4x8x128xf32, #tpu.memory_space<vmem>>, vector<1x2x128xf32>,
    %c3_48 = arith.constant 3 : index
    %c0_49 = arith.constant 0 : index
    %c0_50 = arith.constant 0 : index
    %84 = vector.load %arg1[%c3_48, %c0_49, %c0_50] : memref<4x128x8xf32, #tpu.memory_space<vmem>>, vector<1x128x8xf32>
    %85 = vector.shape_cast %84 : vector<1x128x8xf32> to vector<128x8xf32>
    %cst_51 = arith.constant dense<0.000000e+00> : vector<8x128xf32>
    %86 = tpu.matmul %17, %85, %cst_51 {dimension_numbers = #tpu.dot_dimension_numbers<[1], [1], [0], [0], [0, 0, 1, 0], [], []>} : vector<8x8xf32>, vector<128x8xf32>, vector<8x128xf32> -> vector<8x128xf32>
    %87 = vector.extract_strided_slice %6 {offsets = [3, 0], sizes = [1, 128], strides = [1, 1]} : vector<4x128xf32> to vector<1x128xf32>
    %88 = vector.broadcast %87 : vector<1x128xf32> to vector<8x128xf32>
    %89 = arith.mulf %86, %88 : vector<8x128xf32>
    %90 = vector.extract_strided_slice %89 {offsets = [0, 0], sizes = [2, 128], strides = [1, 1]} : vector<8x128xf32> to vector<2x128xf32>
    %c0_52 = arith.constant 0 : index
    %c6 = arith.constant 6 : index
    %c0_53 = arith.constant 0 : index
    %91 = vector.load %arg3[%c0_52, %c6, %c0_53] : memref<4x8x128xf32, #tpu.memory_space<vmem>>, vector<1x2x128xf32>
    %92 = vector.shape_cast %91 : vector<1x2x128xf32> to vector<2x128xf32>
    %93 = vector.shape_cast %90 : vector<2x128xf32> to vector<1x2x128xf32>
    tpu.vector_store %arg3[%c0_52, %c6, %c0_53], %93 {strides = array<i32>} : memref<4x8x128xf32, #tpu.memory_space<vmem>>, vector<1x2x128xf32>,
    %94 = vector.extract_strided_slice %89 {offsets = [2, 0], sizes = [2, 128], strides = [1, 1]} : vector<8x128xf32> to vector<2x128xf32>
    %c1_54 = arith.constant 1 : index
    %c6_55 = arith.constant 6 : index
    %c0_56 = arith.constant 0 : index
    %95 = vector.load %arg3[%c1_54, %c6_55, %c0_56] : memref<4x8x128xf32, #tpu.memory_space<vmem>>, vector<1x2x128xf32>
    %96 = vector.shape_cast %95 : vector<1x2x128xf32> to vector<2x128xf32>
    %97 = vector.shape_cast %94 : vector<2x128xf32> to vector<1x2x128xf32>
    tpu.vector_store %arg3[%c1_54, %c6_55, %c0_56], %97 {strides = array<i32>} : memref<4x8x128xf32, #tpu.memory_space<vmem>>, vector<1x2x128xf32>,
    %98 = vector.extract_strided_slice %89 {offsets = [4, 0], sizes = [2, 128], strides = [1, 1]} : vector<8x128xf32> to vector<2x128xf32>
    %c2_57 = arith.constant 2 : index
    %c6_58 = arith.constant 6 : index
    %c0_59 = arith.constant 0 : index
    %99 = vector.load %arg3[%c2_57, %c6_58, %c0_59] : memref<4x8x128xf32, #tpu.memory_space<vmem>>, vector<1x2x128xf32>
    %100 = vector.shape_cast %99 : vector<1x2x128xf32> to vector<2x128xf32>
    %101 = vector.shape_cast %98 : vector<2x128xf32> to vector<1x2x128xf32>
    tpu.vector_store %arg3[%c2_57, %c6_58, %c0_59], %101 {strides = array<i32>} : memref<4x8x128xf32, #tpu.memory_space<vmem>>, vector<1x2x128xf32>,
    %102 = vector.extract_strided_slice %89 {offsets = [6, 0], sizes = [2, 128], strides = [1, 1]} : vector<8x128xf32> to vector<2x128xf32>
    %c3_60 = arith.constant 3 : index
    %c6_61 = arith.constant 6 : index
    %c0_62 = arith.constant 0 : index
    %103 = vector.load %arg3[%c3_60, %c6_61, %c0_62] : memref<4x8x128xf32, #tpu.memory_space<vmem>>, vector<1x2x128xf32>
    %104 = vector.shape_cast %103 : vector<1x2x128xf32> to vector<2x128xf32>
    %105 = vector.shape_cast %102 : vector<2x128xf32> to vector<1x2x128xf32>
    tpu.vector_store %arg3[%c3_60, %c6_61, %c0_62], %105 {strides = array<i32>} : memref<4x8x128xf32, #tpu.memory_space<vmem>>, vector<1x2x128xf32>,
    return
  }
  func.func @transform_0(%arg0: i32) -> (i32, i32, i32) {
    %c0_i32 = arith.constant 0 : i32
    %c0_i32_0 = arith.constant 0 : i32
    %c0_i32_1 = arith.constant 0 : i32
    return %c0_i32, %arg0, %c0_i32_0 : i32, i32, i32
  }
  func.func @transform_1(%arg0: i32) -> (i32, i32) {
    %c0_i32 = arith.constant 0 : i32
    %c0_i32_0 = arith.constant 0 : i32
    %c0_i32_1 = arith.constant 0 : i32
    return %c0_i32, %c0_i32_0 : i32, i32
  }
  func.func @transform_2(%arg0: i32) -> (i32, i32, i32) {
    %c0_i32 = arith.constant 0 : i32
    %c0_i32_0 = arith.constant 0 : i32
    %c0_i32_1 = arith.constant 0 : i32
    return %c0_i32, %c0_i32_0, %arg0 : i32, i32, i32
  }
}

</mosaic_0001>

<llo_original>
// kernel: omega_module_forward.1
$region0: #{omega_module_forward.1}
  #allocation0 [shape = 'u32[]', space=smem, size = 0x4, offset = 0x4, fixed_abs, tag = 'smem constant byte address 0x4 - core index']
  #allocation1 [shape = 'u32[144,128]{1,0:T(1,128)}', space=vmem, size = 0x12000, scoped, tag = 'internal scratch']
  %s0 = inlined_call_operand.vmem [shape: f32[4,128,8], index: 0, kind: input, shape index: {}]
  %s1 = inlined_call_operand.vmem [shape: f32[4,2], index: 1, kind: input, shape index: {}]
  %s2 = inlined_call_operand.hbm [shape: f32[4,8,128], index: 2, kind: output, shape index: {}]
  %s3 = sld [smem:[#allocation0]]
  $region18: #{omega_module_forward.1} parent=0
    _
  %s5 = ssub.s32 1, %s3
  %s6 = scalar_select 0, %s5, %s3
  $region1: #{omega_module_forward.1} parent=0
    #allocation2 [shape = 'u8[16384]{0}', space=vmem, size = 0x4000, scoped, tag = 'output window, operand 0, single buffered']
    #allocation3 [shape = 's32[1]{0}', space=sflag, size = 0x4, scoped, tag = 'scoped memory for omega_module_forward.1']
    %7 = vsyncpa [#allocation3], 0
    // Predicated region
    $region2: #{omega_module_forward.1} parent=1 // pred_check
      _
    $region3: #{omega_module_forward.1} parent=1 // pred_check_branch
      %9 = sbr.rel (0) target = $region5
    $region4: #{omega_module_forward.1} parent=1 // pred_region
      _
    $region5: #{omega_module_forward.1} parent=1 // pred_fallthru
      _
    // Predicated region
    $region6: #{omega_module_forward.1} parent=1 // pred_check
      _
    $region7: #{omega_module_forward.1} parent=1 // pred_check_branch
      %11 = sbr.rel (0) target = $region9
    $region8: #{omega_module_forward.1} parent=1 // pred_region
      _
    $region9: #{omega_module_forward.1} parent=1 // pred_fallthru
      _
    %v12 = vld [vmem:[%s1] sm:$0xf]
    %v13 = vmul.f32 %v12, %v12
    %vm14 = vcmask 11264
    %v15 = vsel %vm14, %v13, 0.0
    %16 = vadd.xlane.f32.xlu0 %v15
    %v17 = vpop.xlane.xlu0 %16
    %v18 = vrsqrt.pop %v17
    %v19 = vmul.f32 %v17, %v18
    %vm20 = vcmp.eq.f32.partialorder %v17, inf
    %v21 = vsel %vm20, %v17, %v19
    %vm22 = vcmp.eq.f32.partialorder %v17, 0.0
    %v23 = vand.u32 %v17, 2147483648
    %v24 = vsel %vm22, %v23, %v21
    %v25 = vlaneseq
    %v26 = vshrl.u32 %v25, 7
    %v27 = vlaneseq
    %v28 = vand.u32 %v27, 127
    %v29 = vxor.u32 %v26, 1
    %vm30 = vcmp.eq.s32.totalorder %v28, %v29
    %vm31 = vcmp.gt.s32.totalorder %v28, %v26
    %v32 = vsel %vm31, 1.0, -1.0
    %v33 = vsel %vm30, %v32, 0.0
    %v34 = vld [vmem:[%s0] sm:$0xff]
    %v35 = vld [vmem:[%s0 + $0x8] sm:$0xff]
    %v36 = vld [vmem:[%s0 + $0x10] sm:$0xff]
    %v37 = vld [vmem:[%s0 + $0x18] sm:$0xff]
    %v38 = vld [vmem:[%s0 + $0x20] sm:$0xff]
    %v39 = vld [vmem:[%s0 + $0x28] sm:$0xff]
    %v40 = vld [vmem:[%s0 + $0x30] sm:$0xff]
    %v41 = vld [vmem:[%s0 + $0x38] sm:$0xff]
    %v42 = vld [vmem:[%s0 + $0x40] sm:$0xff]
    %v43 = vld [vmem:[%s0 + $0x48] sm:$0xff]
    %v44 = vld [vmem:[%s0 + $0x50] sm:$0xff]
    %v45 = vld [vmem:[%s0 + $0x58] sm:$0xff]
    %v46 = vld [vmem:[%s0 + $0x60] sm:$0xff]
    %v47 = vld [vmem:[%s0 + $0x68] sm:$0xff]
    %v48 = vld [vmem:[%s0 + $0x70] sm:$0xff]
    %v49 = vld [vmem:[%s0 + $0x78] sm:$0xff]
    %vm50 = vcmask 64512
    %v52 = vsel %vm50, %v33, 0
    %v55 = vsel %vm50, %v34, 0
    %v58 = vsel %vm50, %v35, 0
    %v61 = vsel %vm50, %v36, 0
    %v64 = vsel %vm50, %v37, 0
    %v67 = vsel %vm50, %v38, 0
    %v70 = vsel %vm50, %v39, 0
    %v73 = vsel %vm50, %v40, 0
    %v76 = vsel %vm50, %v41, 0
    %v79 = vsel %vm50, %v42, 0
    %v82 = vsel %vm50, %v43, 0
    %v85 = vsel %vm50, %v44, 0
    %v88 = vsel %vm50, %v45, 0
    %v91 = vsel %vm50, %v46, 0
    %v94 = vsel %vm50, %v47, 0
    %v97 = vsel %vm50, %v48, 0
    %v100 = vsel %vm50, %v49, 0
    %102 = vmatprep.subr.mxu0 0.0
    %103 = vmatpush1.xpose.msra.mxu0 %v55
    %104 = vmatprep.subr.mxu0 0.0
    %105 = vmatpush1.xpose.msra.mxu0 %v58
    %106 = vmatprep.subr.mxu0 0.0
    %107 = vmatpush1.xpose.msra.mxu0 %v61
    %108 = vmatprep.subr.mxu0 0.0
    %109 = vmatpush1.xpose.msra.mxu0 %v64
    %110 = vmatprep.subr.mxu0 0.0
    %111 = vmatpush1.xpose.msra.mxu0 %v67
    %112 = vmatprep.subr.mxu0 0.0
    %113 = vmatpush1.xpose.msra.mxu0 %v70
    %114 = vmatprep.subr.mxu0 0.0
    %115 = vmatpush1.xpose.msra.mxu0 %v73
    %116 = vmatprep.subr.mxu0 0.0
    %117 = vmatpush1.xpose.msra.mxu0 %v76
    %118 = vmatprep.subr.mxu0 0.0
    %119 = vmatpush1.xpose.msra.mxu0 %v79
    %120 = vmatprep.subr.mxu0 0.0
    %121 = vmatpush1.xpose.msra.mxu0 %v82
    %122 = vmatprep.subr.mxu0 0.0
    %123 = vmatpush1.xpose.msra.mxu0 %v85
    %124 = vmatprep.subr.mxu0 0.0
    %125 = vmatpush1.xpose.msra.mxu0 %v88
    %126 = vmatprep.subr.mxu0 0.0
    %127 = vmatpush1.xpose.msra.mxu0 %v91
    %128 = vmatprep.subr.mxu0 0.0
    %129 = vmatpush1.xpose.msra.mxu0 %v94
    %130 = vmatprep.subr.mxu0 0.0
    %131 = vmatpush1.xpose.msra.mxu0 %v97
    %132 = vmatprep.subr.mxu0 0.0
    %133 = vmatpush1.xpose.msra.mxu0 %v100
    %134 = vmatprep.subr.mxu0 0.0
    %135 = vmatpush1.xpose.msra.mxu0 0.0
    %136 = vmatprep.subr.mxu0 0.0
    %137 = vmatpush1.xpose.msra.mxu0 0.0
    %138 = vmatprep.subr.mxu0 0.0
    %139 = vmatpush1.xpose.msra.mxu0 0.0
    %140 = vmatprep.subr.mxu0 0.0
    %141 = vmatpush1.xpose.msra.mxu0 0.0
    %142 = vmatprep.subr.mxu0 0.0
    %143 = vmatpush1.xpose.msra.mxu0 0.0
    %144 = vmatprep.subr.mxu0 0.0
    %145 = vmatpush1.xpose.msra.mxu0 0.0
    %146 = vmatprep.subr.mxu0 0.0
    %147 = vmatpush1.xpose.msra.mxu0 0.0
    %148 = vmatprep.subr.mxu0 0.0
    %149 = vmatpush1.xpose.msra.mxu0 0.0
    %150 = vmatprep.subr.mxu0 0.0
    %151 = vmatpush1.xpose.msra.mxu0 0.0
    %152 = vmatprep.subr.mxu0 0.0
    %153 = vmatpush1.xpose.msra.mxu0 0.0
    %154 = vmatprep.subr.mxu0 0.0
    %155 = vmatpush1.xpose.msra.mxu0 0.0
    %156 = vmatprep.subr.mxu0 0.0
    %157 = vmatpush1.xpose.msra.mxu0 0.0
    %158 = vmatprep.subr.mxu0 0.0
    %159 = vmatpush1.xpose.msra.mxu0 0.0
    %160 = vmatprep.subr.mxu0 0.0
    %161 = vmatpush1.xpose.msra.mxu0 0.0
    %162 = vmatprep.subr.mxu0 0.0
    %163 = vmatpush1.xpose.msra.mxu0 0.0
    %164 = vmatprep.subr.mxu0 0.0
    %165 = vmatpush1.xpose.msra.mxu0 0.0
    %166 = vmatprep.mubr.f32.mxu0 0.0
    %167 = vmatmul.mubr.f32.gmra.mrb[0].mxu0 %v52
    %v168 = vpop.f32.mrb[0].mxu0
    %v169 = vadd.f32 0.0, %v168
    %v170 = vpop.f32.mrb[0].mxu0
    %171 = vdwg.mxu0
    %v172 = vlaneseq
    %v173 = vshrl.u32 %v172, 7
    %v174 = vsub.s32 0, %v173
    %v175 = vrot.slane %v24, %v174
    %v176 = vmul.f32 %v169, %v175
    %177 = vst [vmem:[#allocation2] sm:$0x3] %v176
    %s178 = scalar_lea.vmem [#allocation2], 8
    %179 = vst [vmem:[%s178 - $0x2] sm:$0xc] %v176
    %s180 = scalar_lea.vmem [#allocation2], 16
    %181 = vst [vmem:[%s180 - $0x4] sm:$0x30] %v176
    %s182 = scalar_lea.vmem [#allocation2], 24
    %183 = vst [vmem:[%s182 - $0x6] sm:$0xc0] %v176
    %s184 = scalar_lea.vmem %s0, 128
    %v185 = vld [vmem:[%s184] sm:$0xff]
    %v186 = vld [vmem:[%s184 + $0x8] sm:$0xff]
    %v187 = vld [vmem:[%s184 + $0x10] sm:$0xff]
    %v188 = vld [vmem:[%s184 + $0x18] sm:$0xff]
    %v189 = vld [vmem:[%s184 + $0x20] sm:$0xff]
    %v190 = vld [vmem:[%s184 + $0x28] sm:$0xff]
    %v191 = vld [vmem:[%s184 + $0x30] sm:$0xff]
    %v192 = vld [vmem:[%s184 + $0x38] sm:$0xff]
    %v193 = vld [vmem:[%s184 + $0x40] sm:$0xff]
    %v194 = vld [vmem:[%s184 + $0x48] sm:$0xff]
    %v195 = vld [vmem:[%s184 + $0x50] sm:$0xff]
    %v196 = vld [vmem:[%s184 + $0x58] sm:$0xff]
    %v197 = vld [vmem:[%s184 + $0x60] sm:$0xff]
    %v198 = vld [vmem:[%s184 + $0x68] sm:$0xff]
    %v199 = vld [vmem:[%s184 + $0x70] sm:$0xff]
    %v200 = vld [vmem:[%s184 + $0x78] sm:$0xff]
    %v202 = vsel %vm50, %v185, 0
    %v205 = vsel %vm50, %v186, 0
    %v208 = vsel %vm50, %v187, 0
    %v211 = vsel %vm50, %v188, 0
    %v214 = vsel %vm50, %v189, 0
    %v217 = vsel %vm50, %v190, 0
    %v220 = vsel %vm50, %v191, 0
    %v223 = vsel %vm50, %v192, 0
    %v226 = vsel %vm50, %v193, 0
    %v229 = vsel %vm50, %v194, 0
    %v232 = vsel %vm50, %v195, 0
    %v235 = vsel %vm50, %v196, 0
    %v238 = vsel %vm50, %v197, 0
    %v241 = vsel %vm50, %v198, 0
    %v244 = vsel %vm50, %v199, 0
    %v247 = vsel %vm50, %v200, 0
    %249 = vmatprep.subr.mxu0 0.0
    %250 = vmatpush1.xpose.msra.mxu0 %v202
    %251 = vmatprep.subr.mxu0 0.0
    %252 = vmatpush1.xpose.msra.mxu0 %v205
    %253 = vmatprep.subr.mxu0 0.0
    %254 = vmatpush1.xpose.msra.mxu0 %v208
    %255 = vmatprep.subr.mxu0 0.0
    %256 = vmatpush1.xpose.msra.mxu0 %v211
    %257 = vmatprep.subr.mxu0 0.0
    %258 = vmatpush1.xpose.msra.mxu0 %v214
    %259 = vmatprep.subr.mxu0 0.0
    %260 = vmatpush1.xpose.msra.mxu0 %v217
    %261 = vmatprep.subr.mxu0 0.0
    %262 = vmatpush1.xpose.msra.mxu0 %v220
    %263 = vmatprep.subr.mxu0 0.0
    %264 = vmatpush1.xpose.msra.mxu0 %v223
    %265 = vmatprep.subr.mxu0 0.0
    %266 = vmatpush1.xpose.msra.mxu0 %v226
    %267 = vmatprep.subr.mxu0 0.0
    %268 = vmatpush1.xpose.msra.mxu0 %v229
    %269 = vmatprep.subr.mxu0 0.0
    %270 = vmatpush1.xpose.msra.mxu0 %v232
    %271 = vmatprep.subr.mxu0 0.0
    %272 = vmatpush1.xpose.msra.mxu0 %v235
    %273 = vmatprep.subr.mxu0 0.0
    %274 = vmatpush1.xpose.msra.mxu0 %v238
    %275 = vmatprep.subr.mxu0 0.0
    %276 = vmatpush1.xpose.msra.mxu0 %v241
    %277 = vmatprep.subr.mxu0 0.0
    %278 = vmatpush1.xpose.msra.mxu0 %v244
    %279 = vmatprep.subr.mxu0 0.0
    %280 = vmatpush1.xpose.msra.mxu0 %v247
    %281 = vmatprep.subr.mxu0 0.0
    %282 = vmatpush1.xpose.msra.mxu0 0.0
    %283 = vmatprep.subr.mxu0 0.0
    %284 = vmatpush1.xpose.msra.mxu0 0.0
    %285 = vmatprep.subr.mxu0 0.0
    %286 = vmatpush1.xpose.msra.mxu0 0.0
    %287 = vmatprep.subr.mxu0 0.0
    %288 = vmatpush1.xpose.msra.mxu0 0.0
    %289 = vmatprep.subr.mxu0 0.0
    %290 = vmatpush1.xpose.msra.mxu0 0.0
    %291 = vmatprep.subr.mxu0 0.0
    %292 = vmatpush1.xpose.msra.mxu0 0.0
    %293 = vmatprep.subr.mxu0 0.0
    %294 = vmatpush1.xpose.msra.mxu0 0.0
    %295 = vmatprep.subr.mxu0 0.0
    %296 = vmatpush1.xpose.msra.mxu0 0.0
    %297 = vmatprep.subr.mxu0 0.0
    %298 = vmatpush1.xpose.msra.mxu0 0.0
    %299 = vmatprep.subr.mxu0 0.0
    %300 = vmatpush1.xpose.msra.mxu0 0.0
    %301 = vmatprep.subr.mxu0 0.0
    %302 = vmatpush1.xpose.msra.mxu0 0.0
    %303 = vmatprep.subr.mxu0 0.0
    %304 = vmatpush1.xpose.msra.mxu0 0.0
    %305 = vmatprep.subr.mxu0 0.0
    %306 = vmatpush1.xpose.msra.mxu0 0.0
    %307 = vmatprep.subr.mxu0 0.0
    %308 = vmatpush1.xpose.msra.mxu0 0.0
    %309 = vmatprep.subr.mxu0 0.0
    %310 = vmatpush1.xpose.msra.mxu0 0.0
    %311 = vmatprep.subr.mxu0 0.0
    %312 = vmatpush1.xpose.msra.mxu0 0.0
    %313 = vmatprep.mubr.f32.mxu0 0.0
    %314 = vmatmul.mubr.f32.gmra.mrb[0].mxu0 %v52
    %v315 = vpop.f32.mrb[0].mxu0
    %v316 = vadd.f32 0.0, %v315
    %v317 = vpop.f32.mrb[0].mxu0
    %318 = vdwg.mxu0
    %v319 = vlaneseq
    %v320 = vshrl.u32 %v319, 7
    %v321 = vsub.s32 1, %v320
    %v322 = vrot.slane %v24, %v321
    %v323 = vmul.f32 %v316, %v322
    %324 = vst [vmem:[#allocation2 + $0x2] sm:$0x3] %v323
    %325 = vst [vmem:[%s178] sm:$0xc] %v323
    %326 = vst [vmem:[%s180 - $0x2] sm:$0x30] %v323
    %327 = vst [vmem:[%s182 - $0x4] sm:$0xc0] %v323
    %s328 = scalar_lea.vmem %s0, 256
    %v329 = vld [vmem:[%s328] sm:$0xff]
    %v330 = vld [vmem:[%s328 + $0x8] sm:$0xff]
    %v331 = vld [vmem:[%s328 + $0x10] sm:$0xff]
    %v332 = vld [vmem:[%s328 + $0x18] sm:$0xff]
    %v333 = vld [vmem:[%s328 + $0x20] sm:$0xff]
    %v334 = vld [vmem:[%s328 + $0x28] sm:$0xff]
    %v335 = vld [vmem:[%s328 + $0x30] sm:$0xff]
    %v336 = vld [vmem:[%s328 + $0x38] sm:$0xff]
    %v337 = vld [vmem:[%s328 + $0x40] sm:$0xff]
    %v338 = vld [vmem:[%s328 + $0x48] sm:$0xff]
    %v339 = vld [vmem:[%s328 + $0x50] sm:$0xff]
    %v340 = vld [vmem:[%s328 + $0x58] sm:$0xff]
    %v341 = vld [vmem:[%s328 + $0x60] sm:$0xff]
    %v342 = vld [vmem:[%s328 + $0x68] sm:$0xff]
    %v343 = vld [vmem:[%s328 + $0x70] sm:$0xff]
    %v344 = vld [vmem:[%s328 + $0x78] sm:$0xff]
    %v346 = vsel %vm50, %v329, 0
    %v349 = vsel %vm50, %v330, 0
    %v352 = vsel %vm50, %v331, 0
    %v355 = vsel %vm50, %v332, 0
    %v358 = vsel %vm50, %v333, 0
    %v361 = vsel %vm50, %v334, 0
    %v364 = vsel %vm50, %v335, 0
    %v367 = vsel %vm50, %v336, 0
    %v370 = vsel %vm50, %v337, 0
    %v373 = vsel %vm50, %v338, 0
    %v376 = vsel %vm50, %v339, 0
    %v379 = vsel %vm50, %v340, 0
    %v382 = vsel %vm50, %v341, 0
    %v385 = vsel %vm50, %v342, 0
    %v388 = vsel %vm50, %v343, 0
    %v391 = vsel %vm50, %v344, 0
    %393 = vmatprep.subr.mxu0 0.0
    %394 = vmatpush1.xpose.msra.mxu0 %v346
    %395 = vmatprep.subr.mxu0 0.0
    %396 = vmatpush1.xpose.msra.mxu0 %v349
    %397 = vmatprep.subr.mxu0 0.0
    %398 = vmatpush1.xpose.msra.mxu0 %v352
    %399 = vmatprep.subr.mxu0 0.0
    %400 = vmatpush1.xpose.msra.mxu0 %v355
    %401 = vmatprep.subr.mxu0 0.0
    %402 = vmatpush1.xpose.msra.mxu0 %v358
    %403 = vmatprep.subr.mxu0 0.0
    %404 = vmatpush1.xpose.msra.mxu0 %v361
    %405 = vmatprep.subr.mxu0 0.0
    %406 = vmatpush1.xpose.msra.mxu0 %v364
    %407 = vmatprep.subr.mxu0 0.0
    %408 = vmatpush1.xpose.msra.mxu0 %v367
    %409 = vmatprep.subr.mxu0 0.0
    %410 = vmatpush1.xpose.msra.mxu0 %v370
    %411 = vmatprep.subr.mxu0 0.0
    %412 = vmatpush1.xpose.msra.mxu0 %v373
    %413 = vmatprep.subr.mxu0 0.0
    %414 = vmatpush1.xpose.msra.mxu0 %v376
    %415 = vmatprep.subr.mxu0 0.0
    %416 = vmatpush1.xpose.msra.mxu0 %v379
    %417 = vmatprep.subr.mxu0 0.0
    %418 = vmatpush1.xpose.msra.mxu0 %v382
    %419 = vmatprep.subr.mxu0 0.0
    %420 = vmatpush1.xpose.msra.mxu0 %v385
    %421 = vmatprep.subr.mxu0 0.0
    %422 = vmatpush1.xpose.msra.mxu0 %v388
    %423 = vmatprep.subr.mxu0 0.0
    %424 = vmatpush1.xpose.msra.mxu0 %v391
    %425 = vmatprep.subr.mxu0 0.0
    %426 = vmatpush1.xpose.msra.mxu0 0.0
    %427 = vmatprep.subr.mxu0 0.0
    %428 = vmatpush1.xpose.msra.mxu0 0.0
    %429 = vmatprep.subr.mxu0 0.0
    %430 = vmatpush1.xpose.msra.mxu0 0.0
    %431 = vmatprep.subr.mxu0 0.0
    %432 = vmatpush1.xpose.msra.mxu0 0.0
    %433 = vmatprep.subr.mxu0 0.0
    %434 = vmatpush1.xpose.msra.mxu0 0.0
    %435 = vmatprep.subr.mxu0 0.0
    %436 = vmatpush1.xpose.msra.mxu0 0.0
    %437 = vmatprep.subr.mxu0 0.0
    %438 = vmatpush1.xpose.msra.mxu0 0.0
    %439 = vmatprep.subr.mxu0 0.0
    %440 = vmatpush1.xpose.msra.mxu0 0.0
    %441 = vmatprep.subr.mxu0 0.0
    %442 = vmatpush1.xpose.msra.mxu0 0.0
    %443 = vmatprep.subr.mxu0 0.0
    %444 = vmatpush1.xpose.msra.mxu0 0.0
    %445 = vmatprep.subr.mxu0 0.0
    %446 = vmatpush1.xpose.msra.mxu0 0.0
    %447 = vmatprep.subr.mxu0 0.0
    %448 = vmatpush1.xpose.msra.mxu0 0.0
    %449 = vmatprep.subr.mxu0 0.0
    %450 = vmatpush1.xpose.msra.mxu0 0.0
    %451 = vmatprep.subr.mxu0 0.0
    %452 = vmatpush1.xpose.msra.mxu0 0.0
    %453 = vmatprep.subr.mxu0 0.0
    %454 = vmatpush1.xpose.msra.mxu0 0.0
    %455 = vmatprep.subr.mxu0 0.0
    %456 = vmatpush1.xpose.msra.mxu0 0.0
    %457 = vmatprep.mubr.f32.mxu0 0.0
    %458 = vmatmul.mubr.f32.gmra.mrb[0].mxu0 %v52
    %v459 = vpop.f32.mrb[0].mxu0
    %v460 = vadd.f32 0.0, %v459
    %v461 = vpop.f32.mrb[0].mxu0
    %462 = vdwg.mxu0
    %v463 = vlaneseq
    %v464 = vshrl.u32 %v463, 7
    %v465 = vsub.s32 2, %v464
    %v466 = vrot.slane %v24, %v465
    %v467 = vmul.f32 %v460, %v466
    %468 = vst [vmem:[#allocation2 + $0x4] sm:$0x3] %v467
    %469 = vst [vmem:[%s178 + $0x2] sm:$0xc] %v467
    %470 = vst [vmem:[%s180] sm:$0x30] %v467
    %471 = vst [vmem:[%s182 - $0x2] sm:$0xc0] %v467
    %s472 = scalar_lea.vmem %s0, 384
    %v473 = vld [vmem:[%s472] sm:$0xff]
    %v474 = vld [vmem:[%s472 + $0x8] sm:$0xff]
    %v475 = vld [vmem:[%s472 + $0x10] sm:$0xff]
    %v476 = vld [vmem:[%s472 + $0x18] sm:$0xff]
    %v477 = vld [vmem:[%s472 + $0x20] sm:$0xff]
    %v478 = vld [vmem:[%s472 + $0x28] sm:$0xff]
    %v479 = vld [vmem:[%s472 + $0x30] sm:$0xff]
    %v480 = vld [vmem:[%s472 + $0x38] sm:$0xff]
    %v481 = vld [vmem:[%s472 + $0x40] sm:$0xff]
    %v482 = vld [vmem:[%s472 + $0x48] sm:$0xff]
    %v483 = vld [vmem:[%s472 + $0x50] sm:$0xff]
    %v484 = vld [vmem:[%s472 + $0x58] sm:$0xff]
    %v485 = vld [vmem:[%s472 + $0x60] sm:$0xff]
    %v486 = vld [vmem:[%s472 + $0x68] sm:$0xff]
    %v487 = vld [vmem:[%s472 + $0x70] sm:$0xff]
    %v488 = vld [vmem:[%s472 + $0x78] sm:$0xff]
    %v490 = vsel %vm50, %v473, 0
    %v493 = vsel %vm50, %v474, 0
    %v496 = vsel %vm50, %v475, 0
    %v499 = vsel %vm50, %v476, 0
    %v502 = vsel %vm50, %v477, 0
    %v505 = vsel %vm50, %v478, 0
    %v508 = vsel %vm50, %v479, 0
    %v511 = vsel %vm50, %v480, 0
    %v514 = vsel %vm50, %v481, 0
    %v517 = vsel %vm50, %v482, 0
    %v520 = vsel %vm50, %v483, 0
    %v523 = vsel %vm50, %v484, 0
    %v526 = vsel %vm50, %v485, 0
    %v529 = vsel %vm50, %v486, 0
    %v532 = vsel %vm50, %v487, 0
    %v535 = vsel %vm50, %v488, 0
    %537 = vmatprep.subr.mxu0 0.0
    %538 = vmatpush1.xpose.msra.mxu0 %v490
    %539 = vmatprep.subr.mxu0 0.0
    %540 = vmatpush1.xpose.msra.mxu0 %v493
    %541 = vmatprep.subr.mxu0 0.0
    %542 = vmatpush1.xpose.msra.mxu0 %v496
    %543 = vmatprep.subr.mxu0 0.0
    %544 = vmatpush1.xpose.msra.mxu0 %v499
    %545 = vmatprep.subr.mxu0 0.0
    %546 = vmatpush1.xpose.msra.mxu0 %v502
    %547 = vmatprep.subr.mxu0 0.0
    %548 = vmatpush1.xpose.msra.mxu0 %v505
    %549 = vmatprep.subr.mxu0 0.0
    %550 = vmatpush1.xpose.msra.mxu0 %v508
    %551 = vmatprep.subr.mxu0 0.0
    %552 = vmatpush1.xpose.msra.mxu0 %v511
    %553 = vmatprep.subr.mxu0 0.0
    %554 = vmatpush1.xpose.msra.mxu0 %v514
    %555 = vmatprep.subr.mxu0 0.0
    %556 = vmatpush1.xpose.msra.mxu0 %v517
    %557 = vmatprep.subr.mxu0 0.0
    %558 = vmatpush1.xpose.msra.mxu0 %v520
    %559 = vmatprep.subr.mxu0 0.0
    %560 = vmatpush1.xpose.msra.mxu0 %v523
    %561 = vmatprep.subr.mxu0 0.0
    %562 = vmatpush1.xpose.msra.mxu0 %v526
    %563 = vmatprep.subr.mxu0 0.0
    %564 = vmatpush1.xpose.msra.mxu0 %v529
    %565 = vmatprep.subr.mxu0 0.0
    %566 = vmatpush1.xpose.msra.mxu0 %v532
    %567 = vmatprep.subr.mxu0 0.0
    %568 = vmatpush1.xpose.msra.mxu0 %v535
    %569 = vmatprep.subr.mxu0 0.0
    %570 = vmatpush1.xpose.msra.mxu0 0.0
    %571 = vmatprep.subr.mxu0 0.0
    %572 = vmatpush1.xpose.msra.mxu0 0.0
    %573 = vmatprep.subr.mxu0 0.0
    %574 = vmatpush1.xpose.msra.mxu0 0.0
    %575 = vmatprep.subr.mxu0 0.0
    %576 = vmatpush1.xpose.msra.mxu0 0.0
    %577 = vmatprep.subr.mxu0 0.0
    %578 = vmatpush1.xpose.msra.mxu0 0.0
    %579 = vmatprep.subr.mxu0 0.0
    %580 = vmatpush1.xpose.msra.mxu0 0.0
    %581 = vmatprep.subr.mxu0 0.0
    %582 = vmatpush1.xpose.msra.mxu0 0.0
    %583 = vmatprep.subr.mxu0 0.0
    %584 = vmatpush1.xpose.msra.mxu0 0.0
    %585 = vmatprep.subr.mxu0 0.0
    %586 = vmatpush1.xpose.msra.mxu0 0.0
    %587 = vmatprep.subr.mxu0 0.0
    %588 = vmatpush1.xpose.msra.mxu0 0.0
    %589 = vmatprep.subr.mxu0 0.0
    %590 = vmatpush1.xpose.msra.mxu0 0.0
    %591 = vmatprep.subr.mxu0 0.0
    %592 = vmatpush1.xpose.msra.mxu0 0.0
    %593 = vmatprep.subr.mxu0 0.0
    %594 = vmatpush1.xpose.msra.mxu0 0.0
    %595 = vmatprep.subr.mxu0 0.0
    %596 = vmatpush1.xpose.msra.mxu0 0.0
    %597 = vmatprep.subr.mxu0 0.0
    %598 = vmatpush1.xpose.msra.mxu0 0.0
    %599 = vmatprep.subr.mxu0 0.0
    %600 = vmatpush1.xpose.msra.mxu0 0.0
    %601 = vmatprep.mubr.f32.mxu0 0.0
    %602 = vmatmul.mubr.f32.gmra.mrb[0].mxu0 %v52
    %v603 = vpop.f32.mrb[0].mxu0
    %v604 = vadd.f32 0.0, %v603
    %v605 = vpop.f32.mrb[0].mxu0
    %606 = vdwg.mxu0
    %v607 = vlaneseq
    %v608 = vshrl.u32 %v607, 7
    %v609 = vsub.s32 3, %v608
    %v610 = vrot.slane %v24, %v609
    %v611 = vmul.f32 %v604, %v610
    %612 = vst [vmem:[#allocation2 + $0x6] sm:$0x3] %v611
    %613 = vst [vmem:[%s178 + $0x4] sm:$0xc] %v611
    %614 = vst [vmem:[%s180 + $0x2] sm:$0x30] %v611
    %615 = vst [vmem:[%s182] sm:$0xc0] %v611
    // Predicated region
    $region10: #{omega_module_forward.1} parent=1 // pred_check
      _
    $region11: #{omega_module_forward.1} parent=1 // pred_check_branch
      %617 = sbr.rel (0) target = $region13
    $region12: #{omega_module_forward.1} parent=1 // pred_region
      %s619 = ssub.s32 512, 512
      %620 = vsyncadd [#allocation3], %s619
      %s621 = sshll.u32 [#allocation2], 4
      %s622 = int_to_ptr.vmem [resolvable:$true] %s621
      %627 = dma.vmem_to_hbm [thread:$0]  %s622, 512, %s2, [#allocation3], 128, 128, 8
    $region13: #{omega_module_forward.1} parent=1 // pred_fallthru
      _
    // Predicated region
    $region14: #{omega_module_forward.1} parent=1 // pred_check
      _
    $region15: #{omega_module_forward.1} parent=1 // pred_check_branch
      %629 = sbr.rel (0) target = $region17
    $region16: #{omega_module_forward.1} parent=1 // pred_region
      %630 = dma.done [#allocation3], 512
    $region17: #{omega_module_forward.1} parent=1 // pred_fallthru
      _
    %631 = vsyncpa [#allocation3], 1

</llo_original>
